<compile_context>
chip_gen: v7x
topology: tpu7x:2x2x1
jax: 0.10.0
libtpu: 0.0.40
codegen_flags: <defaults>
</compile_context>

<pallas_src>
import jax
import jax.numpy as jnp
from jax.experimental import pallas as pl
from jax.experimental.pallas import tpu as pltpu


_NEG_SLOPE = 0.01  # PyTorch F.leaky_relu default


def _leaky_relu(x, negative_slope=_NEG_SLOPE):
    # max(x, a*x) == leaky_relu(x) for 0 < a < 1; single VPU op.
    return jnp.maximum(x, negative_slope * x)


def _round_up(n, m):
    return (n + m - 1) // m * m


def generator_kernel(z_ref, c_ref, w1a_ref, w1b_ref, b1_ref,
                     w2_ref, b2_ref, w3_ref, b3_ref, o_ref):
    cdt = w1a_ref.dtype  # bf16 compute dtype for the MXU inputs

    # Fused concat: concat([z, labels], 1) @ W1 == z @ W1[:Z, :] + labels @ W1[Z:, :]
    h = (jnp.dot(z_ref[...].astype(cdt), w1a_ref[...],
                 preferred_element_type=jnp.float32)
         + jnp.dot(c_ref[...].astype(cdt), w1b_ref[...],
                   preferred_element_type=jnp.float32)
         + b1_ref[...])
    h = _leaky_relu(h)
    # F.dropout(p=dkp, training=False) -> identity in eval mode; not emitted.

    # Single hidden layer (num_hidden=1) + LeakyReLU
    h = jnp.dot(h.astype(cdt), w2_ref[...],
                preferred_element_type=jnp.float32) + b2_ref[...]
    h = _leaky_relu(h)

    # Output layer (no activation).  W3 / b3 / o_ref carry the TRUE feature
    # width H, so only real columns are ever stored to HBM.
    o_ref[...] = (jnp.dot(h.astype(cdt), w3_ref[...],
                          preferred_element_type=jnp.float32)
                  + b3_ref[...]).astype(o_ref.dtype)


def prepare_params(params, z_dim, *, compute_dtype=jnp.bfloat16, lane=128):
    """One-time weight preparation (outside the hot path).

    * transpose PyTorch (out, in) weights to (in, out)
    * split W_in into z-rows / label-rows (fused concat)
    * zero-pad the INTERNAL hidden feature dim to a multiple of 128
      (lane-dense intermediates); the final output dim stays at H so the
      kernel writes only real columns
    * cast weights to bf16; biases stay f32 and add into the f32 accumulator
    """
    H = params["w_in"].shape[0]
    Hp = _round_up(H, lane)
    pad_h = Hp - H

    w1t = params["w_in"].T                 # (Z + C, H)
    w1a = w1t[:z_dim]                      # (Z, H)
    w1b = w1t[z_dim:]                      # (C, H)

    def pad_cols(w):                       # (*, H) -> (*, Hp)
        return jnp.pad(w, ((0, 0), (0, pad_h)))

    def pad_rows(w):                       # (H, *) -> (Hp, *)
        return jnp.pad(w, ((0, pad_h), (0, 0)))

    return dict(
        w1a=pad_cols(w1a).astype(compute_dtype),                    # (Z, Hp)
        w1b=pad_cols(w1b).astype(compute_dtype),                    # (C, Hp)
        b1=pad_cols(params["b_in"].reshape(1, -1)).astype(jnp.float32),   # (1, Hp)
        w2=pad_rows(pad_cols(params["w_hid"].T)).astype(compute_dtype),   # (Hp, Hp)
        b2=pad_cols(params["b_hid"].reshape(1, -1)).astype(jnp.float32),  # (1, Hp)
        w3=pad_rows(params["w_out"].T).astype(compute_dtype),       # (Hp, H) - output dim NOT padded
        b3=params["b_out"].reshape(1, -1).astype(jnp.float32),      # (1, H)
        H=H,
        Hp=Hp,
    )


def conditional_generator(z, class_labels, prep, *, block_b=4096,
                          min_grid_steps=4, out_dtype=jnp.float32):
    """Forward pass. `prep` comes from prepare_params() (called once).

    out_dtype=jnp.bfloat16 halves output HBM traffic if the consumer is bf16.
    """
    H, Hp = prep["H"], prep["Hp"]
    B, Z = z.shape
    C = class_labels.shape[1]

    # Batch tile: large tiles (>> 0.35 us/step overhead) for big B, but keep
    # at least `min_grid_steps` grid steps so the "parallel" axis can shard
    # across both TensorCores on v7x.  No batch padding: Pallas clips the
    # tail block's writes, and garbage tail rows are row-independent.
    TB = min(block_b, max(_round_up(pl.cdiv(B, min_grid_steps), 8), 8))
    grid = (pl.cdiv(B, TB),)

    def row_spec(feat):
        return pl.BlockSpec((TB, feat), lambda i: (i, 0))

    def resident_spec(shape):
        return pl.BlockSpec(shape, lambda i: (0, 0))

    out_itemsize = jnp.dtype(out_dtype).itemsize
    weight_bytes = sum(
        int(prep[k].size) * prep[k].dtype.itemsize
        for k in ("w1a", "w1b", "b1", "w2", "b2", "w3", "b3"))
    cost = pl.CostEstimate(
        flops=2 * B * ((Z + C) * Hp + Hp * Hp + Hp * H),
        transcendentals=0,
        bytes_accessed=(z.size * z.dtype.itemsize
                        + class_labels.size * class_labels.dtype.itemsize
                        + weight_bytes
                        + B * H * out_itemsize),
    )

    # NOTE: weights are tiny (Hp=128 -> ~100 KiB bf16) and double-buffered
    # activation tiles at TB=4096 are ~8-10 MiB, well under the scoped-VMEM
    # defaults on v5e/v6e/v7x.  If block_b is pushed past ~8192 on v5e, set
    # pltpu.CompilerParams(vmem_limit_bytes=...) explicitly.
    out = pl.pallas_call(
        generator_kernel,
        out_shape=jax.ShapeDtypeStruct((B, H), out_dtype),
        grid=grid,
        in_specs=[
            row_spec(Z),               # z              (batch-tiled)
            row_spec(C),               # class_labels   (batch-tiled)
            resident_spec((Z, Hp)),    # W1a            (VMEM-resident)
            resident_spec((C, Hp)),    # W1b
            resident_spec((1, Hp)),    # b1
            resident_spec((Hp, Hp)),   # W2
            resident_spec((1, Hp)),    # b2
            resident_spec((Hp, H)),    # W3 (true output width)
            resident_spec((1, H)),     # b3
        ],
        out_specs=pl.BlockSpec((TB, H), lambda i: (i, 0)),
        compiler_params=pltpu.CompilerParams(
            dimension_semantics=("parallel",),   # 2 TCs on v7x
        ),
        cost_estimate=cost,
    )(z, class_labels, prep["w1a"], prep["w1b"], prep["b1"],
      prep["w2"], prep["b2"], prep["w3"], prep["b3"])

    return out


# ----------------------------- references ----------------------------------

def _reference_f32(z, labels, params):
    x = jnp.concatenate([z, labels], axis=1)
    h = jnp.where(x @ params["w_in"].T + params["b_in"] > 0,
                  x @ params["w_in"].T + params["b_in"],
                  _NEG_SLOPE * (x @ params["w_in"].T + params["b_in"]))
    h = _leaky_relu(x @ params["w_in"].T + params["b_in"])
    h = _leaky_relu(h @ params["w_hid"].T + params["b_hid"])
    return h @ params["w_out"].T + params["b_out"]


def _reference_bf16(z, labels, params):
    """Same numerics as the kernel: bf16 matmul inputs, f32 accumulate."""
    bf = jnp.bfloat16

    def lin(a, w, b):
        return jnp.dot(a.astype(bf), w.T.astype(bf),
                       preferred_element_type=jnp.float32) + b

    x = jnp.concatenate([z, labels], axis=1)
    h = _leaky_relu(lin(x, params["w_in"], params["b_in"]))
    h = _leaky_relu(lin(h, params["w_hid"], params["b_hid"]))
    return lin(h, params["w_out"], params["b_out"])


if __name__ == "__main__":
    # Small shapes consistent with the module: batch=8, z_dim=16, class_dim=16,
    # g_hidden_size=32, num_hidden=1, dkp irrelevant in eval mode.
    B, Z, C, H = 8, 16, 16, 32
    key = jax.random.PRNGKey(0)
    kz, kc, k1, k2, k3, k4, k5, k6 = jax.random.split(key, 8)

    z = jax.random.normal(kz, (B, Z), dtype=jnp.float32)
    class_labels = jax.nn.one_hot(
        jax.random.randint(kc, (B,), 0, C), C, dtype=jnp.float32)

    def init_linear(kw, kb, out_f, in_f):
        bound = float(in_f) ** -0.5
        w = jax.random.uniform(kw, (out_f, in_f), jnp.float32, -bound, bound)
        b = jax.random.uniform(kb, (out_f,), jnp.float32, -bound, bound)
        return w, b

    w_in, b_in = init_linear(k1, k2, H, Z + C)
    w_hid, b_hid = init_linear(k3, k4, H, H)
    w_out, b_out = init_linear(k5, k6, H, H)
    params = dict(w_in=w_in, b_in=b_in, w_hid=w_hid, b_hid=b_hid,
                  w_out=w_out, b_out=b_out)

    prep = prepare_params(params, z_dim=Z)          # one-time weight prep
    out = conditional_generator(z, class_labels, prep)
    jax.block_until_ready(out)

    assert out.shape == (B, H)
    # Tight check vs. a reference with matching (bf16-in / f32-acc) numerics.
    ref_bf16 = _reference_bf16(z, class_labels, params)
    assert jnp.allclose(out, ref_bf16, atol=1e-3, rtol=1e-3)
    # Loose check vs. the pure-f32 PyTorch-equivalent forward.
    ref_f32 = _reference_f32(z, class_labels, params)
    assert jnp.allclose(out, ref_f32, atol=5e-2, rtol=5e-2)

    # Also exercise a batch that is NOT a multiple of the tile (tail clipping)
    # to validate the no-padding path.
    B2 = 23
    z2 = jax.random.normal(kz, (B2, Z), dtype=jnp.float32)
    c2 = jax.nn.one_hot(jax.random.randint(kc, (B2,), 0, C), C,
                        dtype=jnp.float32)
    out2 = conditional_generator(z2, c2, prep)
    jax.block_until_ready(out2)
    assert out2.shape == (B2, H)
    assert jnp.allclose(out2, _reference_bf16(z2, c2, params),
                        atol=1e-3, rtol=1e-3)

    print("KERNEL_OK")
</pallas_src>

<mosaic_0001>
module attributes {stable_mosaic.version = 11 : i64} {
  func.func @generator_kernel(%arg0: i32, %arg1: memref<8x16xf32, #tpu.memory_space<vmem>>, %arg2: memref<8x16xf32, #tpu.memory_space<vmem>>, %arg3: memref<16x128xbf16, #tpu.memory_space<vmem>>, %arg4: memref<16x128xbf16, #tpu.memory_space<vmem>>, %arg5: memref<1x128xf32, #tpu.memory_space<vmem>>, %arg6: memref<128x128xbf16, #tpu.memory_space<vmem>>, %arg7: memref<1x128xf32, #tpu.memory_space<vmem>>, %arg8: memref<128x32xbf16, #tpu.memory_space<vmem>>, %arg9: memref<1x32xf32, #tpu.memory_space<vmem>>, %arg10: memref<8x32xf32, #tpu.memory_space<vmem>>) attributes {dimension_semantics = [#tpu.dimension_semantics<parallel>], iteration_bounds = array<i64: 1>, scalar_prefetch = 0 : i64, scratch_operands = 0 : i64, tpu.core_type = #tpu.core_type<tc>, window_params = [{transform_indices = @transform_0, window_bounds = array<i64: 8, 16>}, {transform_indices = @transform_1, window_bounds = array<i64: 8, 16>}, {pipeline_mode = #tpu.pipeline_mode<synchronous>, transform_indices = @transform_2, window_bounds = array<i64: 16, 128>}, {pipeline_mode = #tpu.pipeline_mode<synchronous>, transform_indices = @transform_3, window_bounds = array<i64: 16, 128>}, {pipeline_mode = #tpu.pipeline_mode<synchronous>, transform_indices = @transform_4, window_bounds = array<i64: 1, 128>}, {pipeline_mode = #tpu.pipeline_mode<synchronous>, transform_indices = @transform_5, window_bounds = array<i64: 128, 128>}, {pipeline_mode = #tpu.pipeline_mode<synchronous>, transform_indices = @transform_6, window_bounds = array<i64: 1, 128>}, {pipeline_mode = #tpu.pipeline_mode<synchronous>, transform_indices = @transform_7, window_bounds = array<i64: 128, 32>}, {pipeline_mode = #tpu.pipeline_mode<synchronous>, transform_indices = @transform_8, window_bounds = array<i64: 1, 32>}, {transform_indices = @transform_9, window_bounds = array<i64: 8, 32>}]} {
    %c0 = arith.constant 0 : index
    %c0_0 = arith.constant 0 : index
    %0 = vector.load %arg1[%c0, %c0_0] : memref<8x16xf32, #tpu.memory_space<vmem>>, vector<8x16xf32>
    %1 = arith.truncf %0 : vector<8x16xf32> to vector<8x16xbf16>
    %c0_1 = arith.constant 0 : index
    %c0_2 = arith.constant 0 : index
    %2 = vector.load %arg3[%c0_1, %c0_2] : memref<16x128xbf16, #tpu.memory_space<vmem>>, vector<16x128xbf16>
    %cst = arith.constant dense<0.000000e+00> : vector<8x128xf32>
    %3 = tpu.matmul %1, %2, %cst {dimension_numbers = #tpu.dot_dimension_numbers<[1], [0], [0], [1], [0, 0, 1, 1], [], []>} : vector<8x16xbf16>, vector<16x128xbf16>, vector<8x128xf32> -> vector<8x128xf32>
    %c0_3 = arith.constant 0 : index
    %c0_4 = arith.constant 0 : index
    %4 = vector.load %arg2[%c0_3, %c0_4] : memref<8x16xf32, #tpu.memory_space<vmem>>, vector<8x16xf32>
    %5 = arith.truncf %4 : vector<8x16xf32> to vector<8x16xbf16>
    %c0_5 = arith.constant 0 : index
    %c0_6 = arith.constant 0 : index
    %6 = vector.load %arg4[%c0_5, %c0_6] : memref<16x128xbf16, #tpu.memory_space<vmem>>, vector<16x128xbf16>
    %cst_7 = arith.constant dense<0.000000e+00> : vector<8x128xf32>
    %7 = tpu.matmul %5, %6, %cst_7 {dimension_numbers = #tpu.dot_dimension_numbers<[1], [0], [0], [1], [0, 0, 1, 1], [], []>} : vector<8x16xbf16>, vector<16x128xbf16>, vector<8x128xf32> -> vector<8x128xf32>
    %8 = arith.addf %3, %7 : vector<8x128xf32>
    %c0_8 = arith.constant 0 : index
    %c0_9 = arith.constant 0 : index
    %9 = vector.load %arg5[%c0_8, %c0_9] : memref<1x128xf32, #tpu.memory_space<vmem>>, vector<1x128xf32>
    %10 = vector.broadcast %9 : vector<1x128xf32> to vector<8x128xf32>
    %11 = arith.addf %8, %10 : vector<8x128xf32>
    %cst_10 = arith.constant 0.00999999977 : f32
    %12 = vector.broadcast %cst_10 : f32 to vector<8x128xf32>
    %13 = arith.mulf %12, %11 : vector<8x128xf32>
    %14 = arith.maximumf %11, %13 : vector<8x128xf32>
    %15 = arith.truncf %14 : vector<8x128xf32> to vector<8x128xbf16>
    %c0_11 = arith.constant 0 : index
    %c0_12 = arith.constant 0 : index
    %16 = vector.load %arg6[%c0_11, %c0_12] : memref<128x128xbf16, #tpu.memory_space<vmem>>, vector<128x128xbf16>
    %cst_13 = arith.constant dense<0.000000e+00> : vector<8x128xf32>
    %17 = tpu.matmul %15, %16, %cst_13 {dimension_numbers = #tpu.dot_dimension_numbers<[1], [0], [0], [1], [0, 0, 1, 1], [], []>} : vector<8x128xbf16>, vector<128x128xbf16>, vector<8x128xf32> -> vector<8x128xf32>
    %c0_14 = arith.constant 0 : index
    %c0_15 = arith.constant 0 : index
    %18 = vector.load %arg7[%c0_14, %c0_15] : memref<1x128xf32, #tpu.memory_space<vmem>>, vector<1x128xf32>
    %19 = vector.broadcast %18 : vector<1x128xf32> to vector<8x128xf32>
    %20 = arith.addf %17, %19 : vector<8x128xf32>
    %cst_16 = arith.constant 0.00999999977 : f32
    %21 = vector.broadcast %cst_16 : f32 to vector<8x128xf32>
    %22 = arith.mulf %21, %20 : vector<8x128xf32>
    %23 = arith.maximumf %20, %22 : vector<8x128xf32>
    %24 = arith.truncf %23 : vector<8x128xf32> to vector<8x128xbf16>
    %c0_17 = arith.constant 0 : index
    %c0_18 = arith.constant 0 : index
    %25 = vector.load %arg8[%c0_17, %c0_18] : memref<128x32xbf16, #tpu.memory_space<vmem>>, vector<128x32xbf16>
    %cst_19 = arith.constant dense<0.000000e+00> : vector<8x32xf32>
    %26 = tpu.matmul %24, %25, %cst_19 {dimension_numbers = #tpu.dot_dimension_numbers<[1], [0], [0], [1], [0, 0, 1, 1], [], []>} : vector<8x128xbf16>, vector<128x32xbf16>, vector<8x32xf32> -> vector<8x32xf32>
    %c0_20 = arith.constant 0 : index
    %c0_21 = arith.constant 0 : index
    %27 = vector.load %arg9[%c0_20, %c0_21] : memref<1x32xf32, #tpu.memory_space<vmem>>, vector<1x32xf32>
    %28 = vector.broadcast %27 : vector<1x32xf32> to vector<8x32xf32>
    %29 = arith.addf %26, %28 : vector<8x32xf32>
    %c0_22 = arith.constant 0 : index
    %c0_23 = arith.constant 0 : index
    %30 = vector.load %arg10[%c0_22, %c0_23] : memref<8x32xf32, #tpu.memory_space<vmem>>, vector<8x32xf32>
    tpu.vector_store %arg10[%c0_22, %c0_23], %29 {strides = array<i32>} : memref<8x32xf32, #tpu.memory_space<vmem>>, vector<8x32xf32>,
    return
  }
  func.func @transform_0(%arg0: i32) -> (i32, i32) {
    %c0_i32 = arith.constant 0 : i32
    %c0_i32_0 = arith.constant 0 : i32
    return %arg0, %c0_i32 : i32, i32
  }
  func.func @transform_1(%arg0: i32) -> (i32, i32) {
    %c0_i32 = arith.constant 0 : i32
    %c0_i32_0 = arith.constant 0 : i32
    return %arg0, %c0_i32 : i32, i32
  }
  func.func @transform_2(%arg0: i32) -> (i32, i32) {
    %c0_i32 = arith.constant 0 : i32
    %c0_i32_0 = arith.constant 0 : i32
    %c0_i32_1 = arith.constant 0 : i32
    return %c0_i32, %c0_i32_0 : i32, i32
  }
  func.func @transform_3(%arg0: i32) -> (i32, i32) {
    %c0_i32 = arith.constant 0 : i32
    %c0_i32_0 = arith.constant 0 : i32
    %c0_i32_1 = arith.constant 0 : i32
    return %c0_i32, %c0_i32_0 : i32, i32
  }
  func.func @transform_4(%arg0: i32) -> (i32, i32) {
    %c0_i32 = arith.constant 0 : i32
    %c0_i32_0 = arith.constant 0 : i32
    %c0_i32_1 = arith.constant 0 : i32
    return %c0_i32, %c0_i32_0 : i32, i32
  }
  func.func @transform_5(%arg0: i32) -> (i32, i32) {
    %c0_i32 = arith.constant 0 : i32
    %c0_i32_0 = arith.constant 0 : i32
    %c0_i32_1 = arith.constant 0 : i32
    return %c0_i32, %c0_i32_0 : i32, i32
  }
  func.func @transform_6(%arg0: i32) -> (i32, i32) {
    %c0_i32 = arith.constant 0 : i32
    %c0_i32_0 = arith.constant 0 : i32
    %c0_i32_1 = arith.constant 0 : i32
    return %c0_i32, %c0_i32_0 : i32, i32
  }
  func.func @transform_7(%arg0: i32) -> (i32, i32) {
    %c0_i32 = arith.constant 0 : i32
    %c0_i32_0 = arith.constant 0 : i32
    %c0_i32_1 = arith.constant 0 : i32
    return %c0_i32, %c0_i32_0 : i32, i32
  }
  func.func @transform_8(%arg0: i32) -> (i32, i32) {
    %c0_i32 = arith.constant 0 : i32
    %c0_i32_0 = arith.constant 0 : i32
    %c0_i32_1 = arith.constant 0 : i32
    return %c0_i32, %c0_i32_0 : i32, i32
  }
  func.func @transform_9(%arg0: i32) -> (i32, i32) {
    %c0_i32 = arith.constant 0 : i32
    %c0_i32_0 = arith.constant 0 : i32
    return %arg0, %c0_i32 : i32, i32
  }
}

</mosaic_0001>

<llo_original>
// kernel: tpu_custom_call.1
$region0: #{tpu_custom_call.1}
  #allocation0 [shape = 'u32[]', space=smem, size = 0x4, offset = 0x4, fixed_abs, tag = 'smem constant byte address 0x4 - core index']
  #allocation1 [shape = 'u32[144,128]{1,0:T(1,128)}', space=vmem, size = 0x12000, scoped, tag = 'internal scratch']
  %s0 = inlined_call_operand.vmem [shape: f32[8,16], index: 0, kind: input, shape index: {}]
  %s1 = inlined_call_operand.vmem [shape: f32[8,16], index: 1, kind: input, shape index: {}]
  %s2 = inlined_call_operand.vmem [shape: bf16[16,128], index: 2, kind: input, shape index: {}]
  %s3 = inlined_call_operand.hbm [shape: bf16[16,128], index: 3, kind: input, shape index: {}]
  %s4 = inlined_call_operand.vmem [shape: f32[1,128], index: 4, kind: input, shape index: {}]
  %s5 = inlined_call_operand.vmem [shape: bf16[128,128], index: 5, kind: input, shape index: {}]
  %s6 = inlined_call_operand.vmem [shape: f32[1,128], index: 6, kind: input, shape index: {}]
  %s7 = inlined_call_operand.vmem [shape: bf16[128,32], index: 7, kind: input, shape index: {}]
  %s8 = inlined_call_operand.vmem [shape: f32[1,32], index: 8, kind: input, shape index: {}]
  %s9 = inlined_call_operand.hbm [shape: f32[8,32], index: 9, kind: output, shape index: {}]
  %s10 = sld [smem:[#allocation0]]
  $region50: #{tpu_custom_call.1} parent=0
    _
  %s12 = ssub.s32 1, %s10
  %s13 = scalar_select 0, %s12, %s10
  $region1: #{tpu_custom_call.1} parent=0
    #allocation2 [shape = 'u8[4096]{0}', space=vmem, size = 0x1000, scoped, tag = 'input window, operand 3, single buffered']
    #allocation3 [shape = 's32[1]{0}', space=sflag, size = 0x4, scoped, tag = 'scoped memory for tpu_custom_call.1']
    #allocation4 [shape = 's32[1]{0}', space=sflag, size = 0x4, scoped, tag = 'scoped memory for tpu_custom_call.1']
    #allocation5 [shape = 'u8[4096]{0}', space=vmem, size = 0x1000, scoped, tag = 'output window, operand 0, single buffered']
    %14 = vsyncpa [#allocation3], 0
    %15 = vsyncpa [#allocation4], 0
    // Predicated region
    $region2: #{tpu_custom_call.1} parent=1 // pred_check
      _
    $region3: #{tpu_custom_call.1} parent=1 // pred_check_branch
      %17 = sbr.rel (0) target = $region5
    $region4: #{tpu_custom_call.1} parent=1 // pred_region
      _
    $region5: #{tpu_custom_call.1} parent=1 // pred_fallthru
      _
    // Predicated region
    $region6: #{tpu_custom_call.1} parent=1 // pred_check
      _
    $region7: #{tpu_custom_call.1} parent=1 // pred_check_branch
      %19 = sbr.rel (0) target = $region9
    $region8: #{tpu_custom_call.1} parent=1 // pred_region
      _
    $region9: #{tpu_custom_call.1} parent=1 // pred_fallthru
      _
    // Predicated region
    $region10: #{tpu_custom_call.1} parent=1 // pred_check
      _
    $region11: #{tpu_custom_call.1} parent=1 // pred_check_branch
      %21 = sbr.rel (0) target = $region13
    $region12: #{tpu_custom_call.1} parent=1 // pred_region
      _
    $region13: #{tpu_custom_call.1} parent=1 // pred_fallthru
      _
    // Predicated region
    $region14: #{tpu_custom_call.1} parent=1 // pred_check
      _
    $region15: #{tpu_custom_call.1} parent=1 // pred_check_branch
      %23 = sbr.rel (0) target = $region17
    $region16: #{tpu_custom_call.1} parent=1 // pred_region
      %s25 = ssub.s32 128, 128
      %26 = vsyncadd [#allocation3], %s25
      %s27 = sshll.u32 [#allocation2], 4
      %s28 = int_to_ptr.vmem [resolvable:$true] %s27
      %33 = dma.hbm_to_vmem [thread:$0]  %s3, 128, %s28, [#allocation3], 64, 64, 4
    $region17: #{tpu_custom_call.1} parent=1 // pred_fallthru
      _
    // Predicated region
    $region18: #{tpu_custom_call.1} parent=1 // pred_check
      _
    $region19: #{tpu_custom_call.1} parent=1 // pred_check_branch
      %35 = sbr.rel (0) target = $region21
    $region20: #{tpu_custom_call.1} parent=1 // pred_region
      _
    $region21: #{tpu_custom_call.1} parent=1 // pred_fallthru
      _
    // Predicated region
    $region22: #{tpu_custom_call.1} parent=1 // pred_check
      _
    $region23: #{tpu_custom_call.1} parent=1 // pred_check_branch
      %37 = sbr.rel (0) target = $region25
    $region24: #{tpu_custom_call.1} parent=1 // pred_region
      _
    $region25: #{tpu_custom_call.1} parent=1 // pred_fallthru
      _
    // Predicated region
    $region26: #{tpu_custom_call.1} parent=1 // pred_check
      _
    $region27: #{tpu_custom_call.1} parent=1 // pred_check_branch
      %39 = sbr.rel (0) target = $region29
    $region28: #{tpu_custom_call.1} parent=1 // pred_region
      _
    $region29: #{tpu_custom_call.1} parent=1 // pred_fallthru
      _
    // Predicated region
    $region30: #{tpu_custom_call.1} parent=1 // pred_check
      _
    $region31: #{tpu_custom_call.1} parent=1 // pred_check_branch
      %41 = sbr.rel (0) target = $region33
    $region32: #{tpu_custom_call.1} parent=1 // pred_region
      _
    $region33: #{tpu_custom_call.1} parent=1 // pred_fallthru
      _
    // Predicated region
    $region34: #{tpu_custom_call.1} parent=1 // pred_check
      _
    $region35: #{tpu_custom_call.1} parent=1 // pred_check_branch
      %43 = sbr.rel (0) target = $region37
    $region36: #{tpu_custom_call.1} parent=1 // pred_region
      _
    $region37: #{tpu_custom_call.1} parent=1 // pred_fallthru
      _
    // Predicated region
    $region38: #{tpu_custom_call.1} parent=1 // pred_check
      _
    $region39: #{tpu_custom_call.1} parent=1 // pred_check_branch
      %45 = sbr.rel (0) target = $region41
    $region40: #{tpu_custom_call.1} parent=1 // pred_region
      %46 = dma.done [#allocation3], 128
    $region41: #{tpu_custom_call.1} parent=1 // pred_fallthru
      _
    %v48 = vld [vmem:[%s0] sm:$0xff]
    %v49 = vpack.c.bf16 %v48, %v48
    %v50 = vld [vmem:[%s2] sm:$0xf]
    %v51 = vld [vmem:[%s2 + $0x4] sm:$0xf]
    %v52 = vld [vmem:[%s1] sm:$0xff]
    %v53 = vpack.c.bf16 %v52, %v52
    %v54 = vld [vmem:[#allocation2] sm:$0xf]
    %v55 = vld [vmem:[#allocation2 + $0x4] sm:$0xf]
    %v58 = vunpack.c.l.b16 %v54
    %v59 = vunpack.c.l.b16 %v55
    %v60 = vpack.c.b16 %v59, %v58
    %vm62 = vcmask 130048
    %v64 = vsel %vm62, %v53, 0
    %66 = vmatprep.subr.bf16.mxu0 0
    %67 = vmatpush1.bf16.msra.mxu0 %v60
    %68 = vmatprep.subr.bf16.mxu0 0
    %69 = vmatpush1.bf16.msra.mxu0 0
    %70 = vmatprep.subr.bf16.mxu0 0
    %71 = vmatpush1.bf16.msra.mxu0 0
    %72 = vmatprep.subr.bf16.mxu0 0
    %73 = vmatpush1.bf16.msra.mxu0 0
    %74 = vmatprep.subr.bf16.mxu0 0
    %75 = vmatpush1.bf16.msra.mxu0 0
    %76 = vmatprep.subr.bf16.mxu0 0
    %77 = vmatpush1.bf16.msra.mxu0 0
    %78 = vmatprep.subr.bf16.mxu0 0
    %79 = vmatpush1.bf16.msra.mxu0 0
    %80 = vmatprep.subr.bf16.mxu0 0
    %81 = vmatpush1.bf16.msra.mxu0 0
    %82 = vmatprep.subr.bf16.mxu0 0
    %83 = vmatpush1.bf16.msra.mxu0 0
    %84 = vmatprep.subr.bf16.mxu0 0
    %85 = vmatpush1.bf16.msra.mxu0 0
    %86 = vmatprep.subr.bf16.mxu0 0
    %87 = vmatpush1.bf16.msra.mxu0 0
    %88 = vmatprep.subr.bf16.mxu0 0
    %89 = vmatpush1.bf16.msra.mxu0 0
    %90 = vmatprep.subr.bf16.mxu0 0
    %91 = vmatpush1.bf16.msra.mxu0 0
    %92 = vmatprep.subr.bf16.mxu0 0
    %93 = vmatpush1.bf16.msra.mxu0 0
    %94 = vmatprep.subr.bf16.mxu0 0
    %95 = vmatpush1.bf16.msra.mxu0 0
    %96 = vmatprep.subr.bf16.mxu0 0
    %97 = vmatpush1.bf16.msra.mxu0 0
    %98 = vmatprep.mubr.bf16.mxu0 0
    %99 = vmatmul.mubr.bf16.gmra.mrb[0].mxu0 %v64
    %v100 = vpop.f32.mrb[0].mxu0
    %v101 = vadd.f32 0.0, %v100
    %v102 = vpop.f32.mrb[0].mxu0
    %v103 = vpop.f32.mrb[0].mxu0
    %v104 = vpop.f32.mrb[0].mxu0
    %105 = vdwg.mxu0
    %v108 = vunpack.c.l.b16 %v50
    %v109 = vunpack.c.l.b16 %v51
    %v110 = vpack.c.b16 %v109, %v108
    %v113 = vsel %vm62, %v49, 0
    %115 = vmatprep.subr.bf16.mxu0 0
    %116 = vmatpush1.bf16.msra.mxu0 %v110
    %117 = vmatprep.subr.bf16.mxu0 0
    %118 = vmatpush1.bf16.msra.mxu0 0
    %119 = vmatprep.subr.bf16.mxu0 0
    %120 = vmatpush1.bf16.msra.mxu0 0
    %121 = vmatprep.subr.bf16.mxu0 0
    %122 = vmatpush1.bf16.msra.mxu0 0
    %123 = vmatprep.subr.bf16.mxu0 0
    %124 = vmatpush1.bf16.msra.mxu0 0
    %125 = vmatprep.subr.bf16.mxu0 0
    %126 = vmatpush1.bf16.msra.mxu0 0
    %127 = vmatprep.subr.bf16.mxu0 0
    %128 = vmatpush1.bf16.msra.mxu0 0
    %129 = vmatprep.subr.bf16.mxu0 0
    %130 = vmatpush1.bf16.msra.mxu0 0
    %131 = vmatprep.subr.bf16.mxu0 0
    %132 = vmatpush1.bf16.msra.mxu0 0
    %133 = vmatprep.subr.bf16.mxu0 0
    %134 = vmatpush1.bf16.msra.mxu0 0
    %135 = vmatprep.subr.bf16.mxu0 0
    %136 = vmatpush1.bf16.msra.mxu0 0
    %137 = vmatprep.subr.bf16.mxu0 0
    %138 = vmatpush1.bf16.msra.mxu0 0
    %139 = vmatprep.subr.bf16.mxu0 0
    %140 = vmatpush1.bf16.msra.mxu0 0
    %141 = vmatprep.subr.bf16.mxu0 0
    %142 = vmatpush1.bf16.msra.mxu0 0
    %143 = vmatprep.subr.bf16.mxu0 0
    %144 = vmatpush1.bf16.msra.mxu0 0
    %145 = vmatprep.subr.bf16.mxu0 0
    %146 = vmatpush1.bf16.msra.mxu0 0
    %147 = vmatprep.mubr.bf16.mxu0 0
    %148 = vmatmul.mubr.bf16.gmra.mrb[0].mxu0 %v113
    %v149 = vpop.f32.mrb[0].mxu0
    %v150 = vadd.f32 %v101, %v149
    %v151 = vpop.f32.mrb[0].mxu0
    %v152 = vpop.f32.mrb[0].mxu0
    %v153 = vpop.f32.mrb[0].mxu0
    %154 = vdwg.mxu0
    %v155 = vld [vmem:[%s4] sm:$0x1]
    %v157 = vlaneseq
    %v158 = vshrl.u32 %v157, 7
    %v159 = vsub.s32 0, %v158
    %v160 = vrot.slane %v155, %v159
    %v162 = vadd.f32 %v150, %v160
    %v163 = vmul.f32 %v162, 0.01
    %v164 = vmax.f32 %v162, %v163
    %v165 = vpack.c.bf16 %v164, %v164
    %v166 = vld [vmem:[%s5] sm:$0xf]
    %v167 = vld [vmem:[%s5 + $0x4] sm:$0xf]
    %v168 = vld [vmem:[%s5 + $0x8] sm:$0xf]
    %v169 = vld [vmem:[%s5 + $0xc] sm:$0xf]
    %v170 = vld [vmem:[%s5 + $0x10] sm:$0xf]
    %v171 = vld [vmem:[%s5 + $0x14] sm:$0xf]
    %v172 = vld [vmem:[%s5 + $0x18] sm:$0xf]
    %v173 = vld [vmem:[%s5 + $0x1c] sm:$0xf]
    %v174 = vld [vmem:[%s5 + $0x20] sm:$0xf]
    %v175 = vld [vmem:[%s5 + $0x24] sm:$0xf]
    %v176 = vld [vmem:[%s5 + $0x28] sm:$0xf]
    %v177 = vld [vmem:[%s5 + $0x2c] sm:$0xf]
    %v178 = vld [vmem:[%s5 + $0x30] sm:$0xf]
    %v179 = vld [vmem:[%s5 + $0x34] sm:$0xf]
    %v180 = vld [vmem:[%s5 + $0x38] sm:$0xf]
    %v181 = vld [vmem:[%s5 + $0x3c] sm:$0xf]
    %v182 = vld [vmem:[%s6] sm:$0x1]
    %v184 = vlaneseq
    %v185 = vshrl.u32 %v184, 7
    %v186 = vsub.s32 0, %v185
    %v187 = vrot.slane %v182, %v186
    %v205 = vunpack.c.l.b16 %v166
    %v206 = vunpack.c.l.b16 %v167
    %v207 = vunpack.c.l.b16 %v168
    %v208 = vunpack.c.l.b16 %v169
    %v209 = vunpack.c.l.b16 %v170
    %v210 = vunpack.c.l.b16 %v171
    %v211 = vunpack.c.l.b16 %v172
    %v212 = vunpack.c.l.b16 %v173
    %v213 = vunpack.c.l.b16 %v174
    %v214 = vunpack.c.l.b16 %v175
    %v215 = vunpack.c.l.b16 %v176
    %v216 = vunpack.c.l.b16 %v177
    %v217 = vunpack.c.l.b16 %v178
    %v218 = vunpack.c.l.b16 %v179
    %v219 = vunpack.c.l.b16 %v180
    %v220 = vunpack.c.l.b16 %v181
    %v221 = vpack.c.b16 %v206, %v205
    %v222 = vpack.c.b16 %v208, %v207
    %v223 = vpack.c.b16 %v210, %v209
    %v224 = vpack.c.b16 %v212, %v211
    %v225 = vpack.c.b16 %v214, %v213
    %v226 = vpack.c.b16 %v216, %v215
    %v227 = vpack.c.b16 %v218, %v217
    %v228 = vpack.c.b16 %v220, %v219
    %237 = vmatprep.subr.bf16.mxu0 0
    %238 = vmatpush1.bf16.msra.mxu0 %v221
    %239 = vmatprep.subr.bf16.mxu0 0
    %240 = vmatpush1.bf16.msra.mxu0 %v222
    %241 = vmatprep.subr.bf16.mxu0 0
    %242 = vmatpush1.bf16.msra.mxu0 %v223
    %243 = vmatprep.subr.bf16.mxu0 0
    %244 = vmatpush1.bf16.msra.mxu0 %v224
    %245 = vmatprep.subr.bf16.mxu0 0
    %246 = vmatpush1.bf16.msra.mxu0 %v225
    %247 = vmatprep.subr.bf16.mxu0 0
    %248 = vmatpush1.bf16.msra.mxu0 %v226
    %249 = vmatprep.subr.bf16.mxu0 0
    %250 = vmatpush1.bf16.msra.mxu0 %v227
    %251 = vmatprep.subr.bf16.mxu0 0
    %252 = vmatpush1.bf16.msra.mxu0 %v228
    %253 = vmatprep.subr.bf16.mxu0 0
    %254 = vmatpush1.bf16.msra.mxu0 0
    %255 = vmatprep.subr.bf16.mxu0 0
    %256 = vmatpush1.bf16.msra.mxu0 0
    %257 = vmatprep.subr.bf16.mxu0 0
    %258 = vmatpush1.bf16.msra.mxu0 0
    %259 = vmatprep.subr.bf16.mxu0 0
    %260 = vmatpush1.bf16.msra.mxu0 0
    %261 = vmatprep.subr.bf16.mxu0 0
    %262 = vmatpush1.bf16.msra.mxu0 0
    %263 = vmatprep.subr.bf16.mxu0 0
    %264 = vmatpush1.bf16.msra.mxu0 0
    %265 = vmatprep.subr.bf16.mxu0 0
    %266 = vmatpush1.bf16.msra.mxu0 0
    %267 = vmatprep.subr.bf16.mxu0 0
    %268 = vmatpush1.bf16.msra.mxu0 0
    %269 = vmatprep.mubr.bf16.mxu0 0
    %270 = vmatmul.mubr.bf16.gmra.mrb[0].mxu0 %v165
    %v271 = vpop.f32.mrb[0].mxu0
    %v272 = vadd.f32 %v187, %v271
    %v273 = vpop.f32.mrb[0].mxu0
    %v274 = vpop.f32.mrb[0].mxu0
    %v275 = vpop.f32.mrb[0].mxu0
    %276 = vdwg.mxu0
    %v277 = vmul.f32 %v272, 0.01
    %v278 = vmax.f32 %v272, %v277
    %v279 = vpack.c.bf16 %v278, %v278
    %v280 = vld [vmem:[%s7] sm:$0xf]
    %v281 = vld [vmem:[%s7 + $0x4] sm:$0xf]
    %v282 = vld [vmem:[%s7 + $0x8] sm:$0xf]
    %v283 = vld [vmem:[%s7 + $0xc] sm:$0xf]
    %v284 = vld [vmem:[%s7 + $0x10] sm:$0xf]
    %v285 = vld [vmem:[%s7 + $0x14] sm:$0xf]
    %v286 = vld [vmem:[%s7 + $0x18] sm:$0xf]
    %v287 = vld [vmem:[%s7 + $0x1c] sm:$0xf]
    %v288 = vld [vmem:[%s7 + $0x20] sm:$0xf]
    %v289 = vld [vmem:[%s7 + $0x24] sm:$0xf]
    %v290 = vld [vmem:[%s7 + $0x28] sm:$0xf]
    %v291 = vld [vmem:[%s7 + $0x2c] sm:$0xf]
    %v292 = vld [vmem:[%s7 + $0x30] sm:$0xf]
    %v293 = vld [vmem:[%s7 + $0x34] sm:$0xf]
    %v294 = vld [vmem:[%s7 + $0x38] sm:$0xf]
    %v295 = vld [vmem:[%s7 + $0x3c] sm:$0xf]
    %v296 = vld [vmem:[%s8] sm:$0x1]
    %v298 = vlaneseq
    %v299 = vshrl.u32 %v298, 7
    %v300 = vsub.s32 0, %v299
    %v301 = vrot.slane %v296, %v300
    %v319 = vunpack.c.l.b16 %v280
    %v320 = vunpack.c.l.b16 %v281
    %v321 = vunpack.c.l.b16 %v282
    %v322 = vunpack.c.l.b16 %v283
    %v323 = vunpack.c.l.b16 %v284
    %v324 = vunpack.c.l.b16 %v285
    %v325 = vunpack.c.l.b16 %v286
    %v326 = vunpack.c.l.b16 %v287
    %v327 = vunpack.c.l.b16 %v288
    %v328 = vunpack.c.l.b16 %v289
    %v329 = vunpack.c.l.b16 %v290
    %v330 = vunpack.c.l.b16 %v291
    %v331 = vunpack.c.l.b16 %v292
    %v332 = vunpack.c.l.b16 %v293
    %v333 = vunpack.c.l.b16 %v294
    %v334 = vunpack.c.l.b16 %v295
    %v335 = vpack.c.b16 %v320, %v319
    %v336 = vpack.c.b16 %v322, %v321
    %v337 = vpack.c.b16 %v324, %v323
    %v338 = vpack.c.b16 %v326, %v325
    %v339 = vpack.c.b16 %v328, %v327
    %v340 = vpack.c.b16 %v330, %v329
    %v341 = vpack.c.b16 %v332, %v331
    %v342 = vpack.c.b16 %v334, %v333
    %351 = vmatprep.subr.bf16.mxu0 0
    %352 = vmatpush1.bf16.msra.mxu0 %v335
    %353 = vmatprep.subr.bf16.mxu0 0
    %354 = vmatpush1.bf16.msra.mxu0 %v336
    %355 = vmatprep.subr.bf16.mxu0 0
    %356 = vmatpush1.bf16.msra.mxu0 %v337
    %357 = vmatprep.subr.bf16.mxu0 0
    %358 = vmatpush1.bf16.msra.mxu0 %v338
    %359 = vmatprep.subr.bf16.mxu0 0
    %360 = vmatpush1.bf16.msra.mxu0 %v339
    %361 = vmatprep.subr.bf16.mxu0 0
    %362 = vmatpush1.bf16.msra.mxu0 %v340
    %363 = vmatprep.subr.bf16.mxu0 0
    %364 = vmatpush1.bf16.msra.mxu0 %v341
    %365 = vmatprep.subr.bf16.mxu0 0
    %366 = vmatpush1.bf16.msra.mxu0 %v342
    %367 = vmatprep.subr.bf16.mxu0 0
    %368 = vmatpush1.bf16.msra.mxu0 0
    %369 = vmatprep.subr.bf16.mxu0 0
    %370 = vmatpush1.bf16.msra.mxu0 0
    %371 = vmatprep.subr.bf16.mxu0 0
    %372 = vmatpush1.bf16.msra.mxu0 0
    %373 = vmatprep.subr.bf16.mxu0 0
    %374 = vmatpush1.bf16.msra.mxu0 0
    %375 = vmatprep.subr.bf16.mxu0 0
    %376 = vmatpush1.bf16.msra.mxu0 0
    %377 = vmatprep.subr.bf16.mxu0 0
    %378 = vmatpush1.bf16.msra.mxu0 0
    %379 = vmatprep.subr.bf16.mxu0 0
    %380 = vmatpush1.bf16.msra.mxu0 0
    %381 = vmatprep.subr.bf16.mxu0 0
    %382 = vmatpush1.bf16.msra.mxu0 0
    %383 = vmatprep.mubr.bf16.mxu0 0
    %384 = vmatmul.mubr.bf16.gmra.mrb[0].mxu0 %v279
    %v385 = vpop.f32.mrb[0].mxu0
    %v386 = vadd.f32 %v301, %v385
    %v387 = vpop.f32.mrb[0].mxu0
    %v388 = vpop.f32.mrb[0].mxu0
    %v389 = vpop.f32.mrb[0].mxu0
    %390 = vdwg.mxu0
    %vm391 = vcmask 261120
    %392 = vst.msk [vmem:[#allocation5] sm:$0xff] %vm391, %v386
    // Predicated region
    $region42: #{tpu_custom_call.1} parent=1 // pred_check
      _
    $region43: #{tpu_custom_call.1} parent=1 // pred_check_branch
      %394 = sbr.rel (0) target = $region45
    $region44: #{tpu_custom_call.1} parent=1 // pred_region
      %s396 = ssub.s32 128, 128
      %397 = vsyncadd [#allocation4], %s396
      %s399 = sshll.u32 [#allocation5], 4
      %s400 = int_to_ptr.vmem [resolvable:$true] %s399
      %402 = dma.vmem_to_hbm [thread:$0]  %s400, 128, %s9, [#allocation4]
    $region45: #{tpu_custom_call.1} parent=1 // pred_fallthru
      _
    // Predicated region
    $region46: #{tpu_custom_call.1} parent=1 // pred_check
      _
    $region47: #{tpu_custom_call.1} parent=1 // pred_check_branch
      %404 = sbr.rel (0) target = $region49
    $region48: #{tpu_custom_call.1} parent=1 // pred_region
      %405 = dma.done [#allocation4], 128
    $region49: #{tpu_custom_call.1} parent=1 // pred_fallthru
      _
    %406 = vsyncpa [#allocation3], 1
    %407 = vsyncpa [#allocation4], 1

</llo_original>
